<compile_context>
chip_gen: v7x
topology: tpu7x:2x2x1
jax: 0.10.0
libtpu: 0.0.40
codegen_flags: <defaults>
</compile_context>

<pallas_src>
import math
import functools
import numpy as np
import jax
import jax.numpy as jnp
from jax.experimental import pallas as pl
from jax.experimental.pallas import tpu as pltpu

NEG_SLOPE = 0.2
LRELU_GAIN = math.sqrt(2.0)   # fused_leaky_relu output scale

_LANE = 128
_VMEM_BUDGET = 40 << 20        # working-set budget (fits v7x 64 MiB physical)
_VMEM_LIMIT_BYTES = 48 << 20   # scoped-VMEM limit handed to Mosaic (<=75% of v7x)
_TM_LADDER = (512, 256, 128, 64, 32, 16)


def _round_up(x, m):
    return -(-x // m) * m


def _choose_tile(padded_dim, cap, align=_LANE):
    """Largest multiple of `align` that is <= cap and divides padded_dim."""
    t = min(padded_dim, cap)
    while padded_dim % t:
        t -= align
    return t


def _working_set_bytes(tm, tk, tn, out_itemsize):
    # double-buffered x(bf16) + w(bf16) + out + bias(fp32), plus fp32 acc.
    return (2 * tm * tk * 2 +
            2 * tk * tn * 2 +
            2 * tm * tn * out_itemsize +
            tm * tn * 4 +
            2 * tn * 4)


def _pick_tm(M):
    """tm from a descending ladder of multiples of 16; prefer the largest tile
    whose padded M stays within ~25% of the minimum achievable padding."""
    cands = [(t, _round_up(M, t)) for t in _TM_LADDER]
    min_mp = min(mp for _, mp in cands)
    allowed = (min_mp * 5) // 4
    for t, mp in cands:                    # descending: largest tile first
        if mp <= allowed:
            return t, mp
    return 16, _round_up(M, 16)


# ----------------------------------------------------------------------------
# Pallas kernels
# ----------------------------------------------------------------------------
def _equal_linear_kernel_single_k(x_ref, w_ref, b_ref, o_ref, *, activation):
    # Whole K contraction in one MXU call; fused bias (+LeakyReLU * sqrt(2)).
    out = jnp.dot(x_ref[...], w_ref[...],
                  preferred_element_type=jnp.float32) + b_ref[...]
    if activation:
        out = jnp.where(out >= 0, out, NEG_SLOPE * out) * LRELU_GAIN
    o_ref[...] = out.astype(o_ref.dtype)


def _equal_linear_kernel_multi_k(x_ref, w_ref, b_ref, o_ref, acc_ref, *,
                                 activation):
    @pl.when(pl.program_id(2) == 0)
    def _():
        acc_ref[...] = jnp.zeros_like(acc_ref)

    acc_ref[...] += jnp.dot(x_ref[...], w_ref[...],
                            preferred_element_type=jnp.float32)

    @pl.when(pl.program_id(2) == pl.num_programs(2) - 1)
    def _():
        out = acc_ref[...] + b_ref[...]
        if activation:
            out = jnp.where(out >= 0, out, NEG_SLOPE * out) * LRELU_GAIN
        o_ref[...] = out.astype(o_ref.dtype)


# ----------------------------------------------------------------------------
# Forward wrapper
# ----------------------------------------------------------------------------
@functools.partial(jax.jit, static_argnames=("activation", "out_dim"))
def _equal_linear_fwd(x2d, w_packed, b_packed, *, activation, out_dim):
    M, K = x2d.shape
    Kp, Np = w_packed.shape            # pre-padded to multiples of 128 at init
    out_dtype = x2d.dtype
    out_itemsize = jnp.dtype(out_dtype).itemsize

    # --- M tiling ------------------------------------------------------------
    tm, Mp = _pick_tm(M)

    # --- K/N tiling: prefer the whole bf16 weight resident in VMEM -----------
    if _working_set_bytes(tm, Kp, Np, out_itemsize) <= _VMEM_BUDGET:
        tk, tn = Kp, Np
    else:
        tk, tn = Kp, None
        for cap in (1024, 512, 256, 128):              # keep K resident, tile N
            tn_try = _choose_tile(Np, cap)
            if _working_set_bytes(tm, Kp, tn_try, out_itemsize) <= _VMEM_BUDGET:
                tn = tn_try
                break
        if tn is None:                                 # tile both (huge dims)
            tk = _choose_tile(Kp, 1024)
            tn = _choose_tile(Np, 512)

    # --- v7x megacore: give both TensorCores work on a 'parallel' axis -------
    if (Mp // tm) * (Np // tn) == 1 and tm >= 32:
        tm //= 2                                       # still a multiple of 16

    # --- build padded activation directly in bf16 (K padding MUST be zero) ---
    x_bf = x2d.astype(jnp.bfloat16)
    if (Mp, Kp) != (M, K):
        x_p = jnp.zeros((Mp, Kp), jnp.bfloat16).at[:M, :K].set(x_bf)
    else:
        x_p = x_bf

    n_k = Kp // tk
    grid = (Mp // tm, Np // tn, n_k)

    in_specs = [
        pl.BlockSpec((tm, tk), lambda i, j, k: (i, k)),
        pl.BlockSpec((tk, tn), lambda i, j, k: (k, j)),
        pl.BlockSpec((1, tn), lambda i, j, k: (0, j)),
    ]
    out_spec = pl.BlockSpec((tm, tn), lambda i, j, k: (i, j))
    compiler_params = pltpu.CompilerParams(
        dimension_semantics=("parallel", "parallel", "arbitrary"),
        vmem_limit_bytes=_VMEM_LIMIT_BYTES)
    out_shape = jax.ShapeDtypeStruct((Mp, Np), out_dtype)

    if n_k == 1:
        # Fast path: no fp32 accumulator scratch, no acc->out epilogue copy.
        out = pl.pallas_call(
            functools.partial(_equal_linear_kernel_single_k,
                              activation=activation),
            out_shape=out_shape,
            grid_spec=pltpu.PrefetchScalarGridSpec(
                num_scalar_prefetch=0, grid=grid,
                in_specs=in_specs, out_specs=out_spec),
            compiler_params=compiler_params,
        )(x_p, w_packed, b_packed)
    else:
        out = pl.pallas_call(
            functools.partial(_equal_linear_kernel_multi_k,
                              activation=activation),
            out_shape=out_shape,
            grid_spec=pltpu.PrefetchScalarGridSpec(
                num_scalar_prefetch=0, grid=grid,
                in_specs=in_specs, out_specs=out_spec,
                scratch_shapes=[pltpu.VMEM((tm, tn), jnp.float32)]),
            compiler_params=compiler_params,
        )(x_p, w_packed, b_packed)

    if (Mp, Np) != (M, out_dim):
        out = out[:M, :out_dim]
    return out


# ----------------------------------------------------------------------------
# EqualLinear module (JAX/Pallas, forward only)
# ----------------------------------------------------------------------------
class EqualLinear:
    def __init__(self, key, in_dim, out_dim, bias=True, bias_init=0.0,
                 lr_mul=1.0, activation=None):
        self.in_dim = in_dim
        self.out_dim = out_dim
        self.lr_mul = lr_mul
        self.activation = activation
        self.scale = 1.0 / math.sqrt(in_dim) * lr_mul

        # Same parameterization as torch: randn(out,in)/lr_mul, zeros+bias_init.
        self.weight = jax.random.normal(key, (out_dim, in_dim), jnp.float32) / lr_mul
        self.bias = (jnp.full((out_dim,), float(bias_init), jnp.float32)
                     if bias else None)

        # --- pre-pack once: scaled, transposed, zero-padded, bf16 weights ---
        Kp = _round_up(in_dim, _LANE)
        Np = _round_up(out_dim, _LANE)
        w_eff = (self.weight * self.scale).T                       # (K, N) fp32
        self.w_packed = (jnp.zeros((Kp, Np), jnp.float32)
                         .at[:in_dim, :out_dim].set(w_eff)
                         .astype(jnp.bfloat16))
        b_eff = (self.bias * self.lr_mul if self.bias is not None
                 else jnp.zeros((out_dim,), jnp.float32))
        self.b_packed = (jnp.zeros((1, Np), jnp.float32)
                         .at[0, :out_dim].set(b_eff))

    def __call__(self, x):
        lead = x.shape[:-1]
        x2d = x.reshape(-1, self.in_dim)
        out = _equal_linear_fwd(x2d, self.w_packed, self.b_packed,
                                activation=bool(self.activation),
                                out_dim=self.out_dim)
        return out.reshape(*lead, self.out_dim)


# ----------------------------------------------------------------------------
# Pure-JAX reference (fp32) for verification
# ----------------------------------------------------------------------------
def equal_linear_ref(x, weight, bias, lr_mul, activation):
    in_dim = weight.shape[1]
    scale = 1.0 / math.sqrt(in_dim) * lr_mul
    out = x @ (weight * scale).T
    if activation:
        if bias is not None:
            out = out + bias * lr_mul
        out = jnp.where(out >= 0, out, NEG_SLOPE * out) * LRELU_GAIN
    elif bias is not None:
        out = out + bias * lr_mul
    return out


if __name__ == "__main__":
    key = jax.random.PRNGKey(0)
    k1, k2, k3, kx = jax.random.split(key, 4)

    # 1) activation path (fused LeakyReLU * sqrt(2)), aligned dims
    batch, in_dim, out_dim = 8, 256, 128
    x = jax.random.normal(kx, (batch, in_dim), jnp.float32)
    lin_act = EqualLinear(k1, in_dim, out_dim, bias=True, lr_mul=0.01,
                          activation="fused_lrelu")
    y_act = jax.block_until_ready(lin_act(x))
    ref_act = equal_linear_ref(x, lin_act.weight, lin_act.bias,
                               lin_act.lr_mul, True)
    np.testing.assert_allclose(np.asarray(y_act), np.asarray(ref_act),
                               atol=5e-2, rtol=5e-2)

    # 2) plain linear path, deliberately unaligned dims (exercise M/K/N padding)
    lin_plain = EqualLinear(k2, 200, 72, bias=True, lr_mul=1.0, activation=None)
    x2 = jax.random.normal(k3, (5, 200), jnp.float32)
    y_plain = jax.block_until_ready(lin_plain(x2))
    ref_plain = equal_linear_ref(x2, lin_plain.weight, lin_plain.bias,
                                 1.0, False)
    np.testing.assert_allclose(np.asarray(y_plain), np.asarray(ref_plain),
                               atol=5e-2, rtol=5e-2)

    # 3) leading-dim reshape path (3-D input through the activation layer)
    x3 = jax.random.normal(kx, (2, 3, in_dim), jnp.float32)
    y3 = jax.block_until_ready(lin_act(x3))
    ref3 = equal_linear_ref(x3, lin_act.weight, lin_act.bias,
                            lin_act.lr_mul, True)
    np.testing.assert_allclose(np.asarray(y3), np.asarray(ref3),
                               atol=5e-2, rtol=5e-2)

    assert y_act.shape == (batch, out_dim), y_act.shape
    assert y_plain.shape == (5, 72), y_plain.shape
    assert y3.shape == (2, 3, out_dim), y3.shape
    assert bool(jnp.all(jnp.isfinite(y_act)))
    assert bool(jnp.all(jnp.isfinite(y_plain)))
    assert bool(jnp.all(jnp.isfinite(y3)))
    print("KERNEL_OK")
</pallas_src>

<mosaic_0001>
module attributes {stable_mosaic.version = 11 : i64} {
  func.func @_equal_linear_kernel_single_k(%arg0: i32, %arg1: i32, %arg2: i32, %arg3: memref<16x256xbf16, #tpu.memory_space<vmem>>, %arg4: memref<256x128xbf16, #tpu.memory_space<vmem>>, %arg5: memref<1x128xf32, #tpu.memory_space<vmem>>, %arg6: memref<16x128xf32, #tpu.memory_space<vmem>>) attributes {dimension_semantics = [#tpu.dimension_semantics<parallel>, #tpu.dimension_semantics<parallel>, #tpu.dimension_semantics<arbitrary>], iteration_bounds = array<i64: 1, 1, 1>, scalar_prefetch = 0 : i64, scratch_operands = 0 : i64, tpu.core_type = #tpu.core_type<tc>, window_params = [{transform_indices = @transform_0, window_bounds = array<i64: 16, 256>}, {transform_indices = @transform_1, window_bounds = array<i64: 256, 128>}, {transform_indices = @transform_2, window_bounds = array<i64: 1, 128>}, {transform_indices = @transform_3, window_bounds = array<i64: 16, 128>}]} {
    %c0 = arith.constant 0 : index
    %c0_0 = arith.constant 0 : index
    %0 = vector.load %arg3[%c0, %c0_0] : memref<16x256xbf16, #tpu.memory_space<vmem>>, vector<16x256xbf16>
    %c0_1 = arith.constant 0 : index
    %c0_2 = arith.constant 0 : index
    %1 = vector.load %arg4[%c0_1, %c0_2] : memref<256x128xbf16, #tpu.memory_space<vmem>>, vector<256x128xbf16>
    %cst = arith.constant dense<0.000000e+00> : vector<16x128xf32>
    %2 = tpu.matmul %0, %1, %cst {dimension_numbers = #tpu.dot_dimension_numbers<[1], [0], [0], [1], [0, 0, 1, 1], [], []>} : vector<16x256xbf16>, vector<256x128xbf16>, vector<16x128xf32> -> vector<16x128xf32>
    %c0_3 = arith.constant 0 : index
    %c0_4 = arith.constant 0 : index
    %3 = vector.load %arg5[%c0_3, %c0_4] : memref<1x128xf32, #tpu.memory_space<vmem>>, vector<1x128xf32>
    %4 = vector.broadcast %3 : vector<1x128xf32> to vector<16x128xf32>
    %5 = arith.addf %2, %4 : vector<16x128xf32>
    %cst_5 = arith.constant 0.000000e+00 : f32
    %6 = vector.broadcast %cst_5 : f32 to vector<16x128xf32>
    %7 = arith.cmpf oge, %5, %6 : vector<16x128xf32>
    %cst_6 = arith.constant 2.000000e-01 : f32
    %8 = vector.broadcast %cst_6 : f32 to vector<16x128xf32>
    %9 = arith.mulf %8, %5 : vector<16x128xf32>
    %10 = arith.select %7, %5, %9 : vector<16x128xi1>, vector<16x128xf32>
    %cst_7 = arith.constant 1.41421354 : f32
    %11 = vector.broadcast %cst_7 : f32 to vector<16x128xf32>
    %12 = arith.mulf %10, %11 : vector<16x128xf32>
    %c0_8 = arith.constant 0 : index
    %c0_9 = arith.constant 0 : index
    %13 = vector.load %arg6[%c0_8, %c0_9] : memref<16x128xf32, #tpu.memory_space<vmem>>, vector<16x128xf32>
    tpu.vector_store %arg6[%c0_8, %c0_9], %12 {strides = array<i32>} : memref<16x128xf32, #tpu.memory_space<vmem>>, vector<16x128xf32>,
    return
  }
  func.func @transform_0(%arg0: i32, %arg1: i32, %arg2: i32) -> (i32, i32) {
    %c0_i32 = arith.constant 0 : i32
    return %arg0, %arg2 : i32, i32
  }
  func.func @transform_1(%arg0: i32, %arg1: i32, %arg2: i32) -> (i32, i32) {
    %c0_i32 = arith.constant 0 : i32
    return %arg2, %arg1 : i32, i32
  }
  func.func @transform_2(%arg0: i32, %arg1: i32, %arg2: i32) -> (i32, i32) {
    %c0_i32 = arith.constant 0 : i32
    %c0_i32_0 = arith.constant 0 : i32
    return %c0_i32, %arg1 : i32, i32
  }
  func.func @transform_3(%arg0: i32, %arg1: i32, %arg2: i32) -> (i32, i32) {
    %c0_i32 = arith.constant 0 : i32
    return %arg0, %arg1 : i32, i32
  }
}

</mosaic_0001>

<llo_original>
// kernel: _equal_linear_fwd.1
$region0: #{_equal_linear_fwd.1}
  #allocation0 [shape = 'u32[]', space=smem, size = 0x4, offset = 0x4, fixed_abs, tag = 'smem constant byte address 0x4 - core index']
  #allocation1 [shape = 'u32[144,128]{1,0:T(1,128)}', space=vmem, size = 0x12000, scoped, tag = 'internal scratch']
  %s0 = inlined_call_operand.vmem [shape: bf16[16,256], index: 0, kind: input, shape index: {}]
  %s1 = inlined_call_operand.hbm [shape: bf16[256,128], index: 1, kind: input, shape index: {}]
  %s2 = inlined_call_operand.vmem [shape: f32[1,128], index: 2, kind: input, shape index: {}]
  %s3 = inlined_call_operand.vmem [shape: f32[16,128], index: 3, kind: output, shape index: {}]
  %s4 = sld [smem:[#allocation0]]
  $region26: #{_equal_linear_fwd.1} parent=0
    _
  %s6 = ssub.s32 1, %s4
  %s7 = scalar_select 0, %s6, %s4
  $region1: #{_equal_linear_fwd.1} parent=0
    #allocation2 [shape = 'u8[65536]{0}', space=vmem, size = 0x10000, scoped, tag = 'input window, operand 1, single buffered']
    #allocation3 [shape = 's32[1]{0}', space=sflag, size = 0x4, scoped, tag = 'scoped memory for _equal_linear_fwd.1']
    %8 = vsyncpa [#allocation3], 0
    // Predicated region
    $region2: #{_equal_linear_fwd.1} parent=1 // pred_check
      _
    $region3: #{_equal_linear_fwd.1} parent=1 // pred_check_branch
      %10 = sbr.rel (0) target = $region5
    $region4: #{_equal_linear_fwd.1} parent=1 // pred_region
      _
    $region5: #{_equal_linear_fwd.1} parent=1 // pred_fallthru
      _
    // Predicated region
    $region6: #{_equal_linear_fwd.1} parent=1 // pred_check
      _
    $region7: #{_equal_linear_fwd.1} parent=1 // pred_check_branch
      %12 = sbr.rel (0) target = $region9
    $region8: #{_equal_linear_fwd.1} parent=1 // pred_region
      %s14 = ssub.s32 2048, 2048
      %15 = vsyncadd [#allocation3], %s14
      %s16 = sshll.u32 [#allocation2], 4
      %s17 = int_to_ptr.vmem [resolvable:$true] %s16
      %22 = dma.hbm_to_vmem [thread:$0]  %s1, 2048, %s17, [#allocation3], 64, 64, 4
    $region9: #{_equal_linear_fwd.1} parent=1 // pred_fallthru
      _
    // Predicated region
    $region10: #{_equal_linear_fwd.1} parent=1 // pred_check
      _
    $region11: #{_equal_linear_fwd.1} parent=1 // pred_check_branch
      %24 = sbr.rel (0) target = $region13
    $region12: #{_equal_linear_fwd.1} parent=1 // pred_region
      _
    $region13: #{_equal_linear_fwd.1} parent=1 // pred_fallthru
      _
    // Predicated region
    $region14: #{_equal_linear_fwd.1} parent=1 // pred_check
      _
    $region15: #{_equal_linear_fwd.1} parent=1 // pred_check_branch
      %26 = sbr.rel (0) target = $region17
    $region16: #{_equal_linear_fwd.1} parent=1 // pred_region
      %27 = dma.done [#allocation3], 2048
    $region17: #{_equal_linear_fwd.1} parent=1 // pred_fallthru
      _
    %v29 = vld [vmem:[%s0] sm:$0xff]
    %v30 = vld [vmem:[%s0 + $0x8] sm:$0xff]
    %v31 = vld [vmem:[#allocation2] sm:$0xf]
    %v32 = vld [vmem:[#allocation2 + $0x4] sm:$0xf]
    %v33 = vld [vmem:[#allocation2 + $0x8] sm:$0xf]
    %v34 = vld [vmem:[#allocation2 + $0xc] sm:$0xf]
    %v35 = vld [vmem:[#allocation2 + $0x10] sm:$0xf]
    %v36 = vld [vmem:[#allocation2 + $0x14] sm:$0xf]
    %v37 = vld [vmem:[#allocation2 + $0x18] sm:$0xf]
    %v38 = vld [vmem:[#allocation2 + $0x1c] sm:$0xf]
    %v39 = vld [vmem:[#allocation2 + $0x20] sm:$0xf]
    %v40 = vld [vmem:[#allocation2 + $0x24] sm:$0xf]
    %v41 = vld [vmem:[#allocation2 + $0x28] sm:$0xf]
    %v42 = vld [vmem:[#allocation2 + $0x2c] sm:$0xf]
    %v43 = vld [vmem:[#allocation2 + $0x30] sm:$0xf]
    %v44 = vld [vmem:[#allocation2 + $0x34] sm:$0xf]
    %v45 = vld [vmem:[#allocation2 + $0x38] sm:$0xf]
    %v46 = vld [vmem:[#allocation2 + $0x3c] sm:$0xf]
    %v47 = vld [vmem:[#allocation2 + $0x40] sm:$0xf]
    %v48 = vld [vmem:[#allocation2 + $0x44] sm:$0xf]
    %v49 = vld [vmem:[#allocation2 + $0x48] sm:$0xf]
    %v50 = vld [vmem:[#allocation2 + $0x4c] sm:$0xf]
    %v51 = vld [vmem:[#allocation2 + $0x50] sm:$0xf]
    %v52 = vld [vmem:[#allocation2 + $0x54] sm:$0xf]
    %v53 = vld [vmem:[#allocation2 + $0x58] sm:$0xf]
    %v54 = vld [vmem:[#allocation2 + $0x5c] sm:$0xf]
    %v55 = vld [vmem:[#allocation2 + $0x60] sm:$0xf]
    %v56 = vld [vmem:[#allocation2 + $0x64] sm:$0xf]
    %v57 = vld [vmem:[#allocation2 + $0x68] sm:$0xf]
    %v58 = vld [vmem:[#allocation2 + $0x6c] sm:$0xf]
    %v59 = vld [vmem:[#allocation2 + $0x70] sm:$0xf]
    %v60 = vld [vmem:[#allocation2 + $0x74] sm:$0xf]
    %v61 = vld [vmem:[#allocation2 + $0x78] sm:$0xf]
    %v62 = vld [vmem:[#allocation2 + $0x7c] sm:$0xf]
    %v63 = vld [vmem:[%s2] sm:$0x1]
    %v65 = vlaneseq
    %v66 = vshrl.u32 %v65, 7
    %v67 = vsub.s32 0, %v66
    %v68 = vrot.slane %v63, %v67
    %v72 = vunpack.c.l.b16 %v29
    %v73 = vunpack.c.h.b16 %v29
    %v74 = vunpack.c.l.b16 %v30
    %v75 = vunpack.c.h.b16 %v30
    %v76 = vpack.c.b16 %v74, %v72
    %v77 = vpack.c.b16 %v75, %v73
    %v112 = vunpack.c.l.b16 %v31
    %v113 = vunpack.c.l.b16 %v32
    %v114 = vunpack.c.l.b16 %v33
    %v115 = vunpack.c.l.b16 %v34
    %v116 = vunpack.c.l.b16 %v35
    %v117 = vunpack.c.l.b16 %v36
    %v118 = vunpack.c.l.b16 %v37
    %v119 = vunpack.c.l.b16 %v38
    %v120 = vunpack.c.l.b16 %v39
    %v121 = vunpack.c.l.b16 %v40
    %v122 = vunpack.c.l.b16 %v41
    %v123 = vunpack.c.l.b16 %v42
    %v124 = vunpack.c.l.b16 %v43
    %v125 = vunpack.c.l.b16 %v44
    %v126 = vunpack.c.l.b16 %v45
    %v127 = vunpack.c.l.b16 %v46
    %v128 = vunpack.c.l.b16 %v47
    %v129 = vunpack.c.l.b16 %v48
    %v130 = vunpack.c.l.b16 %v49
    %v131 = vunpack.c.l.b16 %v50
    %v132 = vunpack.c.l.b16 %v51
    %v133 = vunpack.c.l.b16 %v52
    %v134 = vunpack.c.l.b16 %v53
    %v135 = vunpack.c.l.b16 %v54
    %v136 = vunpack.c.l.b16 %v55
    %v137 = vunpack.c.l.b16 %v56
    %v138 = vunpack.c.l.b16 %v57
    %v139 = vunpack.c.l.b16 %v58
    %v140 = vunpack.c.l.b16 %v59
    %v141 = vunpack.c.l.b16 %v60
    %v142 = vunpack.c.l.b16 %v61
    %v143 = vunpack.c.l.b16 %v62
    %v144 = vpack.c.b16 %v113, %v112
    %v145 = vpack.c.b16 %v115, %v114
    %v146 = vpack.c.b16 %v117, %v116
    %v147 = vpack.c.b16 %v119, %v118
    %v148 = vpack.c.b16 %v121, %v120
    %v149 = vpack.c.b16 %v123, %v122
    %v150 = vpack.c.b16 %v125, %v124
    %v151 = vpack.c.b16 %v127, %v126
    %v152 = vpack.c.b16 %v129, %v128
    %v153 = vpack.c.b16 %v131, %v130
    %v154 = vpack.c.b16 %v133, %v132
    %v155 = vpack.c.b16 %v135, %v134
    %v156 = vpack.c.b16 %v137, %v136
    %v157 = vpack.c.b16 %v139, %v138
    %v158 = vpack.c.b16 %v141, %v140
    %v159 = vpack.c.b16 %v143, %v142
    %176 = vmatprep.subr.bf16.mxu0 0
    %177 = vmatpush1.bf16.msra.mxu0 %v144
    %178 = vmatprep.subr.bf16.mxu0 0
    %179 = vmatpush1.bf16.msra.mxu0 %v145
    %180 = vmatprep.subr.bf16.mxu0 0
    %181 = vmatpush1.bf16.msra.mxu0 %v146
    %182 = vmatprep.subr.bf16.mxu0 0
    %183 = vmatpush1.bf16.msra.mxu0 %v147
    %184 = vmatprep.subr.bf16.mxu0 0
    %185 = vmatpush1.bf16.msra.mxu0 %v148
    %186 = vmatprep.subr.bf16.mxu0 0
    %187 = vmatpush1.bf16.msra.mxu0 %v149
    %188 = vmatprep.subr.bf16.mxu0 0
    %189 = vmatpush1.bf16.msra.mxu0 %v150
    %190 = vmatprep.subr.bf16.mxu0 0
    %191 = vmatpush1.bf16.msra.mxu0 %v151
    %192 = vmatprep.subr.bf16.mxu0 0
    %193 = vmatpush1.bf16.msra.mxu0 %v152
    %194 = vmatprep.subr.bf16.mxu0 0
    %195 = vmatpush1.bf16.msra.mxu0 %v153
    %196 = vmatprep.subr.bf16.mxu0 0
    %197 = vmatpush1.bf16.msra.mxu0 %v154
    %198 = vmatprep.subr.bf16.mxu0 0
    %199 = vmatpush1.bf16.msra.mxu0 %v155
    %200 = vmatprep.subr.bf16.mxu0 0
    %201 = vmatpush1.bf16.msra.mxu0 %v156
    %202 = vmatprep.subr.bf16.mxu0 0
    %203 = vmatpush1.bf16.msra.mxu0 %v157
    %204 = vmatprep.subr.bf16.mxu0 0
    %205 = vmatpush1.bf16.msra.mxu0 %v158
    %206 = vmatprep.subr.bf16.mxu0 0
    %207 = vmatpush1.bf16.msra.mxu0 %v159
    %208 = vmatprep.mubr.bf16.mxu0 %v77
    %209 = vmatmul.mubr.bf16.gmra.mrb[0].mxu0 %v76
    %v210 = vpop.f32.mrb[0].mxu0
    %v211 = vadd.f32 %v68, %v210
    %v212 = vpop.f32.mrb[0].mxu0
    %v213 = vpop.f32.mrb[0].mxu0
    %v214 = vadd.f32 %v68, %v213
    %v215 = vpop.f32.mrb[0].mxu0
    %216 = vdwg.mxu0
    %vm217 = vcmp.ge.f32.partialorder %v211, 0.0
    %vm218 = vcmp.ge.f32.partialorder %v214, 0.0
    %v219 = vmul.f32 %v211, 0.2
    %v220 = vmul.f32 %v214, 0.2
    %v221 = vsel %vm217, %v211, %v219
    %v222 = vsel %vm218, %v214, %v220
    %v223 = vmul.f32 %v221, 1.4142135
    %v224 = vmul.f32 %v222, 1.4142135
    %225 = vst [vmem:[%s3] sm:$0xff] %v223
    %226 = vst [vmem:[%s3 + $0x8] sm:$0xff] %v224
    // Predicated region
    $region18: #{_equal_linear_fwd.1} parent=1 // pred_check
      _
    $region19: #{_equal_linear_fwd.1} parent=1 // pred_check_branch
      %228 = sbr.rel (0) target = $region21
    $region20: #{_equal_linear_fwd.1} parent=1 // pred_region
      _
    $region21: #{_equal_linear_fwd.1} parent=1 // pred_fallthru
      _
    // Predicated region
    $region22: #{_equal_linear_fwd.1} parent=1 // pred_check
      _
    $region23: #{_equal_linear_fwd.1} parent=1 // pred_check_branch
      %230 = sbr.rel (0) target = $region25
    $region24: #{_equal_linear_fwd.1} parent=1 // pred_region
      _
    $region25: #{_equal_linear_fwd.1} parent=1 // pred_fallthru
      _
    %231 = vsyncpa [#allocation3], 1

</llo_original>
